<compile_context>
chip_gen: v7x
topology: tpu7x:2x2x1
jax: 0.10.0
libtpu: 0.0.40
codegen_flags: <defaults>
</compile_context>

<pallas_src>
import functools
from math import sqrt

import jax
import jax.numpy as jnp
from jax import lax
from jax.experimental import pallas as pl
from jax.experimental.pallas import tpu as pltpu


def get_padding(kernel_size, dilation=1):
    return int((kernel_size * dilation - dilation) / 2)


def _round_up(v, m):
    return (v + m - 1) // m * m


def _mrb_kernel(x_ref, w_ref, b_ref, o_ref, *, offsets, tile_l, pad_rows):
    # x_ref : (1, 1, C_in, tile_l + halo) bf16  -- NCL input tile with halo
    # w_ref : (Cp, Kp) bf16  -- all taps stacked along K, pre-scaled by 1/n
    # b_ref : (Cp, 1)  f32   -- summed biases / n, zero-padded to Cp
    # o_ref : (1, Cp, tile_l)
    x = x_ref[0, 0].astype(jnp.float32)                  # (C_in, tile_l+halo)
    # im2col: lane-shifted slices stacked along the contraction axis.
    cols = [x[:, off:off + tile_l] for off in offsets]   # each (C_in, tile_l)
    if pad_rows:
        cols.append(jnp.zeros((pad_rows, tile_l), jnp.float32))
    col = jnp.concatenate(cols, axis=0).astype(jnp.bfloat16)   # (Kp, tile_l)
    acc = jnp.dot(w_ref[...], col, preferred_element_type=jnp.float32)
    o_ref[0] = (acc + b_ref[...]).astype(o_ref.dtype)    # lane-dense store


def mrb_forward(x_ncl, weights, biases, kernels, dilation, *, tile_l_target=512):
    """MRB forward.

    x_ncl   : (N, C_in, L)  -- PyTorch NCL layout
    weights : list of (C_out, C_in, k) arrays, one per kernel size
    biases  : list of (C_out,) arrays
    Returns (N, C_out, L).
    """
    n, c_in, L = x_ncl.shape
    c_out = weights[0].shape[0]
    n_kernels = len(kernels)

    pads = [get_padding(k, dilation) for k in kernels]
    left = max(pads)
    right = max(max((k - 1) * dilation - p for k, p in zip(kernels, pads)), 0)
    halo = left + right

    # --- L tiling: lane-dense tiles (multiples of 128) ----------------------
    tile_l = tile_l_target if L >= tile_l_target else _round_up(L, 128)
    n_tiles = pl.cdiv(L, tile_l)
    l_total = n_tiles * tile_l

    # Pad length (conv halo + tile round-up), build per-tile halo windows.
    x_pad = jnp.pad(x_ncl, ((0, 0), (0, 0), (left, right + (l_total - L))))
    x_tiles = jnp.stack(
        [x_pad[:, :, i * tile_l:i * tile_l + tile_l + halo]
         for i in range(n_tiles)],
        axis=1,
    ).astype(jnp.bfloat16)                    # (N, n_tiles, C_in, tile_l+halo)

    # --- stack all (kernel, tap) pairs along the contraction axis -----------
    w_cols, offsets = [], []
    for w, k, p in zip(weights, kernels, pads):
        for t in range(k):
            w_cols.append(w[:, :, t])                       # (C_out, C_in)
            offsets.append(left - p + t * dilation)
    w_all = jnp.concatenate(w_cols, axis=1) * (1.0 / n_kernels)  # (C_out, T*C_in)
    b_all = sum(biases) * (1.0 / n_kernels)                      # (C_out,)

    cp = _round_up(c_out, 8)
    k_real = w_all.shape[1]
    k_pad = _round_up(k_real, 8)
    w_all = jnp.pad(w_all, ((0, cp - c_out), (0, k_pad - k_real))
                    ).astype(jnp.bfloat16)                       # (Cp, Kp)
    b_all = jnp.pad(b_all, (0, cp - c_out)).reshape(cp, 1
                    ).astype(jnp.float32)                        # (Cp, 1)

    kernel = functools.partial(
        _mrb_kernel,
        offsets=tuple(offsets),
        tile_l=tile_l,
        pad_rows=k_pad - k_real,
    )

    out = pl.pallas_call(
        kernel,
        out_shape=jax.ShapeDtypeStruct((n, cp, l_total), x_ncl.dtype),
        grid_spec=pltpu.PrefetchScalarGridSpec(
            num_scalar_prefetch=0,
            grid=(n, n_tiles),
            in_specs=[
                pl.BlockSpec((1, 1, c_in, tile_l + halo),
                             lambda b, l: (b, l, 0, 0)),
                pl.BlockSpec((cp, k_pad), lambda b, l: (0, 0)),
                pl.BlockSpec((cp, 1), lambda b, l: (0, 0)),
            ],
            out_specs=pl.BlockSpec((1, cp, tile_l), lambda b, l: (b, 0, l)),
        ),
        compiler_params=pltpu.CompilerParams(
            dimension_semantics=("parallel", "parallel"),
        ),
    )(x_tiles, w_all, b_all)

    # Slice padded channels / padded length back off (still NCL, no transpose).
    return out[:, :c_out, :L]


def _reference(x_ncl, weights, biases, kernels, dilation):
    """Pure-JAX f32 reference using lax.conv_general_dilated (matches nn.Conv1d)."""
    y = 0.0
    for w, b, k in zip(weights, biases, kernels):
        p = get_padding(k, dilation)
        out = lax.conv_general_dilated(
            x_ncl, w,
            window_strides=(1,),
            padding=[(p, p)],
            rhs_dilation=(dilation,),
            dimension_numbers=("NCH", "OIH", "NCH"),
        )
        y = y + out + b[None, :, None]
    return y / len(kernels)


if __name__ == "__main__":
    # Module config (odd kernels so padding keeps length, as in typical usage).
    channels_in, channels_out = 4, 8
    kernels = [3, 5, 7]
    dilation = 1
    N, L = 2, 16

    key = jax.random.PRNGKey(0)
    keys = jax.random.split(key, 2 * len(kernels) + 1)

    # Deterministic init mirroring nn.Conv1d + kaiming_normal_:
    #   weight ~ N(0, sqrt(2 / fan_in)),  bias ~ U(-1/sqrt(fan_in), 1/sqrt(fan_in))
    weights, biases = [], []
    for i, k in enumerate(kernels):
        fan_in = channels_in * k
        w = jax.random.normal(keys[2 * i], (channels_out, channels_in, k),
                              dtype=jnp.float32) * sqrt(2.0 / fan_in)
        bound = 1.0 / sqrt(fan_in)
        b = jax.random.uniform(keys[2 * i + 1], (channels_out,),
                               minval=-bound, maxval=bound, dtype=jnp.float32)
        weights.append(w)
        biases.append(b)

    x = jax.random.normal(keys[-1], (N, channels_in, L), dtype=jnp.float32)

    out = mrb_forward(x, weights, biases, kernels, dilation)
    out = jax.block_until_ready(out)

    ref = _reference(x, weights, biases, kernels, dilation)
    assert out.shape == (N, channels_out, L)
    # bf16 MXU operands (f32 accumulation) -> loosened tolerance vs f32 reference.
    assert jnp.allclose(out, ref, atol=5e-2, rtol=5e-2)

    print("KERNEL_OK")
</pallas_src>

<mosaic_0001>
module attributes {stable_mosaic.version = 11 : i64} {
  func.func @_mrb_kernel(%arg0: i32, %arg1: i32, %arg2: memref<1x1x4x134xbf16, #tpu.memory_space<vmem>>, %arg3: memref<8x64xbf16, #tpu.memory_space<vmem>>, %arg4: memref<8x1xf32, #tpu.memory_space<vmem>>, %arg5: memref<1x8x128xf32, #tpu.memory_space<vmem>>) attributes {dimension_semantics = [#tpu.dimension_semantics<parallel>, #tpu.dimension_semantics<parallel>], iteration_bounds = array<i64: 2, 1>, scalar_prefetch = 0 : i64, scratch_operands = 0 : i64, tpu.core_type = #tpu.core_type<tc>, window_params = [{transform_indices = @transform_0, window_bounds = array<i64: 1, 1, 4, 134>}, {pipeline_mode = #tpu.pipeline_mode<synchronous>, transform_indices = @transform_1, window_bounds = array<i64: 8, 64>}, {pipeline_mode = #tpu.pipeline_mode<synchronous>, transform_indices = @transform_2, window_bounds = array<i64: 8, 1>}, {transform_indices = @transform_3, window_bounds = array<i64: 1, 8, 128>}]} {
    %c0 = arith.constant 0 : index
    %c0_0 = arith.constant 0 : index
    %c0_1 = arith.constant 0 : index
    %c0_2 = arith.constant 0 : index
    %0 = vector.load %arg2[%c0, %c0_0, %c0_1, %c0_2] : memref<1x1x4x134xbf16, #tpu.memory_space<vmem>>, vector<1x1x4x134xbf16>
    %1 = vector.shape_cast %0 : vector<1x1x4x134xbf16> to vector<4x134xbf16>
    %2 = arith.extf %1 : vector<4x134xbf16> to vector<4x134xf32>
    %3 = vector.extract_strided_slice %2 {offsets = [0, 2], sizes = [4, 128], strides = [1, 1]} : vector<4x134xf32> to vector<4x128xf32>
    %4 = vector.extract_strided_slice %2 {offsets = [0, 3], sizes = [4, 128], strides = [1, 1]} : vector<4x134xf32> to vector<4x128xf32>
    %5 = vector.extract_strided_slice %2 {offsets = [0, 4], sizes = [4, 128], strides = [1, 1]} : vector<4x134xf32> to vector<4x128xf32>
    %6 = vector.extract_strided_slice %2 {offsets = [0, 1], sizes = [4, 128], strides = [1, 1]} : vector<4x134xf32> to vector<4x128xf32>
    %7 = vector.extract_strided_slice %2 {offsets = [0, 2], sizes = [4, 128], strides = [1, 1]} : vector<4x134xf32> to vector<4x128xf32>
    %8 = vector.extract_strided_slice %2 {offsets = [0, 3], sizes = [4, 128], strides = [1, 1]} : vector<4x134xf32> to vector<4x128xf32>
    %9 = vector.extract_strided_slice %2 {offsets = [0, 4], sizes = [4, 128], strides = [1, 1]} : vector<4x134xf32> to vector<4x128xf32>
    %10 = vector.extract_strided_slice %2 {offsets = [0, 5], sizes = [4, 128], strides = [1, 1]} : vector<4x134xf32> to vector<4x128xf32>
    %11 = vector.extract_strided_slice %2 {offsets = [0, 0], sizes = [4, 128], strides = [1, 1]} : vector<4x134xf32> to vector<4x128xf32>
    %12 = vector.extract_strided_slice %2 {offsets = [0, 1], sizes = [4, 128], strides = [1, 1]} : vector<4x134xf32> to vector<4x128xf32>
    %13 = vector.extract_strided_slice %2 {offsets = [0, 2], sizes = [4, 128], strides = [1, 1]} : vector<4x134xf32> to vector<4x128xf32>
    %14 = vector.extract_strided_slice %2 {offsets = [0, 3], sizes = [4, 128], strides = [1, 1]} : vector<4x134xf32> to vector<4x128xf32>
    %15 = vector.extract_strided_slice %2 {offsets = [0, 4], sizes = [4, 128], strides = [1, 1]} : vector<4x134xf32> to vector<4x128xf32>
    %16 = vector.extract_strided_slice %2 {offsets = [0, 5], sizes = [4, 128], strides = [1, 1]} : vector<4x134xf32> to vector<4x128xf32>
    %17 = vector.extract_strided_slice %2 {offsets = [0, 6], sizes = [4, 128], strides = [1, 1]} : vector<4x134xf32> to vector<4x128xf32>
    %cst = arith.constant 0.000000e+00 : f32
    %18 = vector.broadcast %cst : f32 to vector<4x128xf32>
    %19 = tpu.concatenate %3, %4, %5, %6, %7, %8, %9, %10, %11, %12, %13, %14, %15, %16, %17, %18 in 0 : vector<4x128xf32>, vector<4x128xf32>, vector<4x128xf32>, vector<4x128xf32>, vector<4x128xf32>, vector<4x128xf32>, vector<4x128xf32>, vector<4x128xf32>, vector<4x128xf32>, vector<4x128xf32>, vector<4x128xf32>, vector<4x128xf32>, vector<4x128xf32>, vector<4x128xf32>, vector<4x128xf32>, vector<4x128xf32> -> vector<64x128xf32>
    %20 = arith.truncf %19 : vector<64x128xf32> to vector<64x128xbf16>
    %c0_3 = arith.constant 0 : index
    %c0_4 = arith.constant 0 : index
    %21 = vector.load %arg3[%c0_3, %c0_4] : memref<8x64xbf16, #tpu.memory_space<vmem>>, vector<8x64xbf16>
    %cst_5 = arith.constant dense<0.000000e+00> : vector<8x128xf32>
    %22 = tpu.matmul %21, %20, %cst_5 {dimension_numbers = #tpu.dot_dimension_numbers<[1], [0], [0], [1], [0, 0, 1, 1], [], []>} : vector<8x64xbf16>, vector<64x128xbf16>, vector<8x128xf32> -> vector<8x128xf32>
    %c0_6 = arith.constant 0 : index
    %c0_7 = arith.constant 0 : index
    %23 = vector.load %arg4[%c0_6, %c0_7] : memref<8x1xf32, #tpu.memory_space<vmem>>, vector<8x1xf32>
    %24 = vector.broadcast %23 : vector<8x1xf32> to vector<8x128xf32>
    %25 = arith.addf %22, %24 : vector<8x128xf32>
    %c0_8 = arith.constant 0 : index
    %c0_9 = arith.constant 0 : index
    %c0_10 = arith.constant 0 : index
    %26 = vector.load %arg5[%c0_8, %c0_9, %c0_10] : memref<1x8x128xf32, #tpu.memory_space<vmem>>, vector<1x8x128xf32>
    %27 = vector.shape_cast %26 : vector<1x8x128xf32> to vector<8x128xf32>
    %28 = vector.shape_cast %25 : vector<8x128xf32> to vector<1x8x128xf32>
    tpu.vector_store %arg5[%c0_8, %c0_9, %c0_10], %28 {strides = array<i32>} : memref<1x8x128xf32, #tpu.memory_space<vmem>>, vector<1x8x128xf32>,
    return
  }
  func.func @transform_0(%arg0: i32, %arg1: i32) -> (i32, i32, i32, i32) {
    %c0_i32 = arith.constant 0 : i32
    %c0_i32_0 = arith.constant 0 : i32
    %c0_i32_1 = arith.constant 0 : i32
    return %arg0, %arg1, %c0_i32, %c0_i32_0 : i32, i32, i32, i32
  }
  func.func @transform_1(%arg0: i32, %arg1: i32) -> (i32, i32) {
    %c0_i32 = arith.constant 0 : i32
    %c0_i32_0 = arith.constant 0 : i32
    %c0_i32_1 = arith.constant 0 : i32
    return %c0_i32, %c0_i32_0 : i32, i32
  }
  func.func @transform_2(%arg0: i32, %arg1: i32) -> (i32, i32) {
    %c0_i32 = arith.constant 0 : i32
    %c0_i32_0 = arith.constant 0 : i32
    %c0_i32_1 = arith.constant 0 : i32
    return %c0_i32, %c0_i32_0 : i32, i32
  }
  func.func @transform_3(%arg0: i32, %arg1: i32) -> (i32, i32, i32) {
    %c0_i32 = arith.constant 0 : i32
    %c0_i32_0 = arith.constant 0 : i32
    return %arg0, %c0_i32, %arg1 : i32, i32, i32
  }
}

</mosaic_0001>

<llo_original>
// kernel: tpu_custom_call.1
$region0: #{tpu_custom_call.1}
  #allocation0 [shape = 'u32[]', space=smem, size = 0x4, offset = 0x4, fixed_abs, tag = 'smem constant byte address 0x4 - core index']
  #allocation1 [shape = 'u32[144,128]{1,0:T(1,128)}', space=vmem, size = 0x12000, scoped, tag = 'internal scratch']
  %s0 = inlined_call_operand.vmem [shape: bf16[2,1,4,134], index: 0, kind: input, shape index: {}]
  %s1 = inlined_call_operand.vmem [shape: bf16[8,64], index: 1, kind: input, shape index: {}]
  %s2 = inlined_call_operand.vmem [shape: f32[8,1], index: 2, kind: input, shape index: {}]
  %s3 = inlined_call_operand.hbm [shape: f32[2,8,128], index: 3, kind: output, shape index: {}]
  %s4 = sld [smem:[#allocation0]]
  $region45: #{tpu_custom_call.1} parent=0
    _
  %s6 = ssub.s32 1, %s4
  %s7 = scalar_select 0, %s6, %s4
  $region1: #{tpu_custom_call.1} parent=0
    #allocation2 [shape = 'u8[8192]{0}', space=vmem, size = 0x2000, scoped, tag = 'output window, operand 0']
    #allocation3 [shape = 's32[2]{0}', space=sflag, size = 0x8, scoped, tag = 'scoped memory for tpu_custom_call.1']
    %8 = vsyncpa [#allocation3], 0
    %s9 = scalar_lea.sflag [#allocation3], 1
    %10 = vsyncpa %s9, 0
    loop: start=0, step=1, limit=4
    $region2: #{tpu_custom_call.1} parent=1 // loop_pre_header
      _
    $region3: #{tpu_custom_call.1} parent=1 // loop_header
      %s12 = sphi 0, %s16
      %p13 = scmp.ge.s32.totalorder %s12, 4
      %s19 = sphi 0, %s31
      %s20 = sphi 0, %s27
      %s21 = sphi 0, %s19
      %s22 = sphi 0, %s20
      %s23 = sphi 0, %s21
      %s24 = sphi 0, %s22
      %s36 = sphi 0, %s38
      %s39 = sphi 0, %s36
      %s40 = sphi 0, %s39
      %s56 = sphi 0, %s40
      %s60 = sphi 0, %s60
      %s62 = sphi 0, %s60
      %s63 = sphi 0, %s62
      %s77 = sphi 0, %s63
      %s81 = sphi 0, %s81
      %s83 = sphi 0, %s81
      %s84 = sphi 0, %s83
      %s98 = sphi 0, %s84
      %s106 = sphi 0, %s108
      %s109 = sphi 0, %s106
      %s110 = sphi 0, %s109
      %s126 = sphi 0, %s110
    $region4: #{tpu_custom_call.1} parent=1 // loop_header_branch
      %15 = sbr.rel (%p13) target = $region8
    $region5: #{tpu_custom_call.1} parent=1 // loop_body
      %s17 = ssub.s32 %s12, 1
      %s18 = ssub.s32 %s12, 2
      %s25 = sadd.s32 1, %s20
      %p26 = scmp.ge.s32.totalorder %s25, 1
      %s27 = scalar_select %p26, 0, %s25
      %s28 = sadd.s32 1, %s19
      %s29 = scalar_select %p26, %s28, %s19
      %p30 = scmp.ge.s32.totalorder %s29, 2
      %s31 = scalar_select %p30, 0, %s29
      %s32 = ssub.s32 %s19, %s31
      %s33 = ssub.s32 %s20, %s27
      %s34 = sor.u32 %s32, %s33
      %p35 = scmp.eq.s32.totalorder %s34, 0
      %s37 = sadd.s32 %s36, 1
      %s38 = scalar_select %p35, %s36, %s37
      %p41 = pneg %p35
      %p42 = scmp.eq.s32.totalorder %s12, 1
      %p43 = por %p41, %p42
      %p44 = scmp.ne.s32.totalorder %s36, %s39
      %p45 = scmp.eq.s32.totalorder %s12, 0
      %p46 = por %p44, %p45
      %p47 = scmp.ne.s32.totalorder %s36, %s39
      %p48 = scmp.eq.s32.totalorder %s17, 1
      %p49 = por %p47, %p48
      %p50 = scmp.ne.s32.totalorder %s39, %s40
      %p51 = scmp.eq.s32.totalorder %s17, 0
      %p52 = por %p50, %p51
      %p53 = scmp.ne.s32.totalorder %s39, %s40
      %p54 = scmp.eq.s32.totalorder %s18, 1
      %p55 = por %p53, %p54
      %p57 = scmp.ne.s32.totalorder %s40, %s56
      %p58 = scmp.eq.s32.totalorder %s18, 0
      %p59 = por %p57, %p58
      %s61 = sadd.s32 %s60, 1
      %p64 = scmp.eq.s32.totalorder %s12, 1
      %p65 = scmp.ne.s32.totalorder %s60, %s62
      %p66 = scmp.eq.s32.totalorder %s12, 0
      %p67 = por %p65, %p66
      %p68 = scmp.ne.s32.totalorder %s60, %s62
      %p69 = scmp.eq.s32.totalorder %s17, 1
      %p70 = por %p68, %p69
      %p71 = scmp.ne.s32.totalorder %s62, %s63
      %p72 = scmp.eq.s32.totalorder %s17, 0
      %p73 = por %p71, %p72
      %p74 = scmp.ne.s32.totalorder %s62, %s63
      %p75 = scmp.eq.s32.totalorder %s18, 1
      %p76 = por %p74, %p75
      %p78 = scmp.ne.s32.totalorder %s63, %s77
      %p79 = scmp.eq.s32.totalorder %s18, 0
      %p80 = por %p78, %p79
      %s82 = sadd.s32 %s81, 1
      %p85 = scmp.eq.s32.totalorder %s12, 1
      %p86 = scmp.ne.s32.totalorder %s81, %s83
      %p87 = scmp.eq.s32.totalorder %s12, 0
      %p88 = por %p86, %p87
      %p89 = scmp.ne.s32.totalorder %s81, %s83
      %p90 = scmp.eq.s32.totalorder %s17, 1
      %p91 = por %p89, %p90
      %p92 = scmp.ne.s32.totalorder %s83, %s84
      %p93 = scmp.eq.s32.totalorder %s17, 0
      %p94 = por %p92, %p93
      %p95 = scmp.ne.s32.totalorder %s83, %s84
      %p96 = scmp.eq.s32.totalorder %s18, 1
      %p97 = por %p95, %p96
      %p99 = scmp.ne.s32.totalorder %s84, %s98
      %p100 = scmp.eq.s32.totalorder %s18, 0
      %p101 = por %p99, %p100
      %s102 = ssub.s32 %s19, %s31
      %s103 = ssub.s32 %s20, %s27
      %s104 = sor.u32 %s102, %s103
      %p105 = scmp.eq.s32.totalorder %s104, 0
      %s107 = sadd.s32 %s106, 1
      %s108 = scalar_select %p105, %s106, %s107
      %p111 = pneg %p105
      %p112 = scmp.eq.s32.totalorder %s12, 1
      %p113 = por %p111, %p112
      %p114 = scmp.ne.s32.totalorder %s106, %s109
      %p115 = scmp.eq.s32.totalorder %s12, 0
      %p116 = por %p114, %p115
      %p117 = scmp.ne.s32.totalorder %s106, %s109
      %p118 = scmp.eq.s32.totalorder %s17, 1
      %p119 = por %p117, %p118
      %p120 = scmp.ne.s32.totalorder %s109, %s110
      %p121 = scmp.eq.s32.totalorder %s17, 0
      %p122 = por %p120, %p121
      %p123 = scmp.ne.s32.totalorder %s109, %s110
      %p124 = scmp.eq.s32.totalorder %s18, 1
      %p125 = por %p123, %p124
      %p127 = scmp.ne.s32.totalorder %s110, %s126
      %p128 = scmp.eq.s32.totalorder %s18, 0
      %p129 = por %p127, %p128
      %p130 = scmp.le.s32.totalorder 1, %s12
      %p131 = scmp.lt.s32.totalorder %s12, 3
      %p132 = pnand %p130, %p131
      %p133 = pneg %p132
      // Predicated region
      $region9: #{tpu_custom_call.1} parent=5 // pred_check
        _
      $region10: #{tpu_custom_call.1} parent=5 // pred_check_branch
        %135 = sbr.rel (%p132) target = $region12
      $region11: #{tpu_custom_call.1} parent=5 // pred_region
        %s136 = ssub.s32 %s12, 1
        // Predicated region
        $region13: #{tpu_custom_call.1} parent=11 // pred_check
          %p137 = pneg %p73
        $region14: #{tpu_custom_call.1} parent=11 // pred_check_branch
          %139 = sbr.rel (%p137) target = $region16
        $region15: #{tpu_custom_call.1} parent=11 // pred_region
          _
        $region16: #{tpu_custom_call.1} parent=11 // pred_fallthru
          _
        // Predicated region
        $region17: #{tpu_custom_call.1} parent=11 // pred_check
          %p140 = pneg %p94
        $region18: #{tpu_custom_call.1} parent=11 // pred_check_branch
          %142 = sbr.rel (%p140) target = $region20
        $region19: #{tpu_custom_call.1} parent=11 // pred_region
          _
        $region20: #{tpu_custom_call.1} parent=11 // pred_fallthru
          _
      $region12: #{tpu_custom_call.1} parent=5 // pred_fallthru
        _
      %p143 = scmp.lt.s32.totalorder %s12, 2
      // Predicated region
      $region21: #{tpu_custom_call.1} parent=5 // pred_check
        %p144 = pneg %p143
      $region22: #{tpu_custom_call.1} parent=5 // pred_check_branch
        %146 = sbr.rel (%p144) target = $region24
      $region23: #{tpu_custom_call.1} parent=5 // pred_region
        // Predicated region
        $region25: #{tpu_custom_call.1} parent=23 // pred_check
          %p147 = pneg %p46
        $region26: #{tpu_custom_call.1} parent=23 // pred_check_branch
          %149 = sbr.rel (%p147) target = $region28
        $region27: #{tpu_custom_call.1} parent=23 // pred_region
          %p150 = scmp.lt.s32.totalorder %s19, 1
          %s151 = scalar_select %p150, %s19, 1
          %p152 = scmp.lt.s32.totalorder %s20, 0
          %s153 = scalar_select %p152, %s20, 0
          %s154 = smul.addr %s153, 2
          %s155 = smul.addr %s151, 2
          %s156 = sadd.s32 %s154, %s155
          %s157 = smul.addr %s156, 2
          %s158 = scalar_lea.vmem %s0, %s157
        $region28: #{tpu_custom_call.1} parent=23 // pred_fallthru
          _
      $region24: #{tpu_custom_call.1} parent=5 // pred_fallthru
        _
      %p159 = scmp.le.s32.totalorder 1, %s12
      %p160 = scmp.lt.s32.totalorder %s12, 3
      %p161 = pnand %p159, %p160
      %p162 = pneg %p161
      // Predicated region
      $region29: #{tpu_custom_call.1} parent=5 // pred_check
        _
      $region30: #{tpu_custom_call.1} parent=5 // pred_check_branch
        %164 = sbr.rel (%p161) target = $region32
      $region31: #{tpu_custom_call.1} parent=5 // pred_region
        %s165 = ssub.s32 %s12, 1
        %p166 = scmp.lt.s32.totalorder %s21, 1
        %s167 = scalar_select %p166, %s21, 1
        %p168 = scmp.lt.s32.totalorder %s22, 0
        %s169 = scalar_select %p168, %s22, 0
        %s170 = smul.addr %s169, 2
        %s171 = smul.addr %s167, 2
        %s172 = sadd.s32 %s170, %s171
        %s173 = smul.addr %s172, 2
        %s174 = scalar_lea.vmem %s0, %s173
        %p175 = pneg %p52
        %p176 = pneg %p49
        %p177 = pneg %p73
        %p178 = pneg %p70
        %p179 = pneg %p94
        %p180 = pneg %p91
        %p181 = pneg %p122
        %p182 = pneg %p119
        %s183 = sand.u32 %s109, 1
        %s184 = scalar_lea.sflag [#allocation3], %s183
        %s185 = sand.u32 %s109, 1
        %s186 = smul.addr %s185, 8
        %s187 = scalar_lea.vmem [#allocation2], %s186
        %p188 = scmp.lt.s32.totalorder %s21, 1
        %s189 = scalar_select %p188, %s21, 1
        %p190 = scmp.lt.s32.totalorder %s22, 0
        %s191 = scalar_select %p190, %s22, 0
        %s192 = smul.addr %s191, 2
        %s193 = smul.addr %s189, 2
        %s194 = sadd.s32 %s192, %s193
        %s195 = smul.addr %s194, 2
        %s196 = scalar_lea.vmem %s0, %s195
        %v198 = vld [vmem:[%s196] sm:$0xf]
        %v199 = vunpack.c.l.bf16 %v198
        %v201 = vcombine.high %v199, %v199
        %v203 = vcombine.low %v199, %v199
        %204 = vrot.lane.b32.xlu0 %v203, 127
        %v205 = vpop.permute.xlu0 %204
        %206 = vrot.lane.b32.xlu0 %v199, 127
        %v207 = vpop.permute.xlu0 %206
        %vm208 = vcmask 1039360
        %v209 = vsel %vm208, %v205, %v207
        %212 = vrot.lane.b32.xlu0 %v199, 126
        %v213 = vpop.permute.xlu0 %212
        %214 = vrot.lane.b32.xlu0 %v201, 126
        %v215 = vpop.permute.xlu0 %214
        %vm216 = vcmask 1031168
        %v217 = vsel %vm216, %v213, %v215
        %220 = vrot.lane.b32.xlu0 %v203, 1
        %v221 = vpop.permute.xlu0 %220
        %222 = vrot.lane.b32.xlu0 %v199, 1
        %v223 = vpop.permute.xlu0 %222
        %vm224 = vcmask 7168
        %v225 = vsel %vm224, %v221, %v223
        %228 = vrot.lane.b32.xlu0 %v203, 125
        %v229 = vpop.permute.xlu0 %228
        %230 = vrot.lane.b32.xlu0 %v199, 125
        %v231 = vpop.permute.xlu0 %230
        %vm232 = vcmask 1022976
        %v233 = vsel %vm232, %v229, %v231
        %236 = vrot.lane.b32.xlu0 %v199, 2
        %v237 = vpop.permute.xlu0 %236
        %239 = vrot.lane.b32.xlu0 %v199, 124
        %v240 = vpop.permute.xlu0 %239
        %241 = vrot.lane.b32.xlu0 %v201, 124
        %v242 = vpop.permute.xlu0 %241
        %vm243 = vcmask 1014784
        %v244 = vsel %vm243, %v240, %v242
        %vm247 = vcmask 1043456
        %v248 = vsel %vm247, %v199, %v209
        %v249 = vsel %vm247, %v201, %v207
        %v250 = vsel %vm247, %v217, %v221
        %v251 = vsel %vm247, %v215, %v225
        %v252 = vsel %vm247, %v217, %v233
        %v253 = vsel %vm247, %v215, %v231
        %v254 = vsel %vm247, %v237, %v221
        %v255 = vsel %vm247, %v237, %v225
        %v256 = vsel %vm247, %v244, 0.0
        %v257 = vsel %vm247, %v242, 0.0
        %v258 = vpack.c.bf16 %v250, %v248
        %v259 = vpack.c.bf16 %v251, %v249
        %v260 = vpack.c.bf16 %v252, %v248
        %v261 = vpack.c.bf16 %v253, %v249
        %v262 = vpack.c.bf16 %v248, %v254
        %v263 = vpack.c.bf16 %v249, %v255
        %v264 = vpack.c.bf16 %v256, %v252
        %v265 = vpack.c.bf16 %v257, %v253
        %v266 = vld [vmem:[%s1] sm:$0xf]
        %v267 = vld [vmem:[%s2] sm:$0xff]
        %269 = vset.pattern.permute.xlu0 0
        %270 = vperm.xlu0 %269, %v267
        %v271 = vpop.permute.xlu0 %270
        %281 = vrot.lane.b32.xlu0 %v258, 126
        %v282 = vpop.permute.xlu0 %281
        %283 = vrot.lane.b32.xlu0 %v259, 126
        %v284 = vpop.permute.xlu0 %283
        %285 = vrot.lane.b32.xlu0 %v260, 126
        %v286 = vpop.permute.xlu0 %285
        %287 = vrot.lane.b32.xlu0 %v261, 126
        %v288 = vpop.permute.xlu0 %287
        %289 = vrot.lane.b32.xlu0 %v262, 126
        %v290 = vpop.permute.xlu0 %289
        %291 = vrot.lane.b32.xlu0 %v263, 126
        %v292 = vpop.permute.xlu0 %291
        %293 = vrot.lane.b32.xlu0 %v264, 126
        %v294 = vpop.permute.xlu0 %293
        %295 = vrot.lane.b32.xlu0 %v265, 126
        %v296 = vpop.permute.xlu0 %295
        %vm297 = vcmask 1031168
        %v298 = vsel %vm297, %v282, %v284
        %v299 = vsel %vm297, %v286, %v288
        %v300 = vsel %vm297, %v290, %v292
        %v301 = vsel %vm297, %v294, %v296
        %vm306 = vcmask 523264
        %v308 = vsel %vm306, %v266, 0
        %310 = vmatprep.subr.bf16.mxu0 0
        %311 = vmatpush1.bf16.msra.mxu0 %v298
        %312 = vmatprep.subr.bf16.mxu0 0
        %313 = vmatpush1.bf16.msra.mxu0 %v299
        %314 = vmatprep.subr.bf16.mxu0 0
        %315 = vmatpush1.bf16.msra.mxu0 %v300
        %316 = vmatprep.subr.bf16.mxu0 0
        %317 = vmatpush1.bf16.msra.mxu0 %v301
        %318 = vmatprep.subr.bf16.mxu0 0
        %319 = vmatpush1.bf16.msra.mxu0 0
        %320 = vmatprep.subr.bf16.mxu0 0
        %321 = vmatpush1.bf16.msra.mxu0 0
        %322 = vmatprep.subr.bf16.mxu0 0
        %323 = vmatpush1.bf16.msra.mxu0 0
        %324 = vmatprep.subr.bf16.mxu0 0
        %325 = vmatpush1.bf16.msra.mxu0 0
        %326 = vmatprep.subr.bf16.mxu0 0
        %327 = vmatpush1.bf16.msra.mxu0 0
        %328 = vmatprep.subr.bf16.mxu0 0
        %329 = vmatpush1.bf16.msra.mxu0 0
        %330 = vmatprep.subr.bf16.mxu0 0
        %331 = vmatpush1.bf16.msra.mxu0 0
        %332 = vmatprep.subr.bf16.mxu0 0
        %333 = vmatpush1.bf16.msra.mxu0 0
        %334 = vmatprep.subr.bf16.mxu0 0
        %335 = vmatpush1.bf16.msra.mxu0 0
        %336 = vmatprep.subr.bf16.mxu0 0
        %337 = vmatpush1.bf16.msra.mxu0 0
        %338 = vmatprep.subr.bf16.mxu0 0
        %339 = vmatpush1.bf16.msra.mxu0 0
        %340 = vmatprep.subr.bf16.mxu0 0
        %341 = vmatpush1.bf16.msra.mxu0 0
        %342 = vmatprep.mubr.bf16.mxu0 0
        %343 = vmatmul.mubr.bf16.gmra.mrb[0].mxu0 %v308
        %v344 = vpop.f32.mrb[0].mxu0
        %v345 = vadd.f32 %v271, %v344
        %v346 = vpop.f32.mrb[0].mxu0
        %v347 = vpop.f32.mrb[0].mxu0
        %v348 = vpop.f32.mrb[0].mxu0
        %349 = vdwg.mxu0
        %350 = vst [vmem:[%s187] sm:$0xff] %v345
        %s351 = sand.u32 %s109, 1
        %s352 = scalar_lea.sflag [#allocation3], %s351
        %s353 = sand.u32 %s109, 1
        %s354 = smul.addr %s353, 8
        %s355 = scalar_lea.vmem [#allocation2], %s354
        // Predicated region
        $region33: #{tpu_custom_call.1} parent=31 // pred_check
          %p356 = pneg %p119
        $region34: #{tpu_custom_call.1} parent=31 // pred_check_branch
          %358 = sbr.rel (%p356) target = $region36
        $region35: #{tpu_custom_call.1} parent=31 // pred_region
          %s360 = ssub.s32 128, 128
          %361 = vsyncadd %s352, %s360
          %s362 = sadd.s32 %s22, %s21
          %s363 = smul.addr %s362, 128
          %s364 = scalar_lea.hbm %s3, %s363
          %s366 = sshll.u32 %s355, 4
          %s367 = int_to_ptr.vmem [resolvable:$true] %s366
          %369 = dma.vmem_to_hbm [thread:$0]  %s367, 128, %s364, %s352
        $region36: #{tpu_custom_call.1} parent=31 // pred_fallthru
          _
      $region32: #{tpu_custom_call.1} parent=5 // pred_fallthru
        _
      %p370 = scmp.le.s32.totalorder 2, %s12
      // Predicated region
      $region37: #{tpu_custom_call.1} parent=5 // pred_check
        %p371 = pneg %p370
      $region38: #{tpu_custom_call.1} parent=5 // pred_check_branch
        %373 = sbr.rel (%p371) target = $region40
      $region39: #{tpu_custom_call.1} parent=5 // pred_region
        %s374 = ssub.s32 %s12, 2
        // Predicated region
        $region41: #{tpu_custom_call.1} parent=39 // pred_check
          %p375 = pneg %p125
        $region42: #{tpu_custom_call.1} parent=39 // pred_check_branch
          %377 = sbr.rel (%p375) target = $region44
        $region43: #{tpu_custom_call.1} parent=39 // pred_region
          %s378 = sand.u32 %s110, 1
          %s379 = scalar_lea.sflag [#allocation3], %s378
          %s380 = sand.u32 %s110, 1
          %s381 = smul.addr %s380, 8
          %s382 = scalar_lea.vmem [#allocation2], %s381
          %383 = dma.done %s379, 128
        $region44: #{tpu_custom_call.1} parent=39 // pred_fallthru
          _
      $region40: #{tpu_custom_call.1} parent=5 // pred_fallthru
        _
    $region6: #{tpu_custom_call.1} parent=1 // loop_footer
      %s16 = sadd.s32 1, %s12
    $region7: #{tpu_custom_call.1} parent=1 // loop_footer_branch
      %11 = sbr.rel target = $region3
    $region8: #{tpu_custom_call.1} parent=1 // loop_exit
      _
    %384 = vsyncpa [#allocation3], 1
    %s385 = scalar_lea.sflag [#allocation3], 1
    %386 = vsyncpa %s385, 1

</llo_original>
